<compile_context>
chip_gen: v7x
topology: tpu7x:2x2x1
jax: 0.10.0
libtpu: 0.0.40
codegen_flags: <defaults>
</compile_context>

<pallas_src>
import jax
import jax.numpy as jnp
from jax.experimental import pallas as pl
from jax.experimental.pallas import tpu as pltpu

EPS = 1e-8


def _l2norm_kernel(x_ref, o_ref):
    # (tile_n, D) tile: rows on sublanes, feature dim D on lanes.
    x = x_ref[...].astype(jnp.float32)

    # Per-row reductions (XLU), computed directly on x -- x1 never materialized.
    row_max = jnp.max(x, axis=-1, keepdims=True)        # (tile_n, 1)
    sq_sum = jnp.sum(x * x, axis=-1, keepdims=True)     # (tile_n, 1)

    # ||x / row_max||_2 == sqrt(sum(x^2)) * |1 / row_max|
    # These ops act on (tile_n, 1) only -> negligible; kept exact so the result
    # matches the PyTorch/JAX reference within 1e-5.
    inv_max = 1.0 / row_max
    norm = jnp.sqrt(sq_sum) * jnp.abs(inv_max) + EPS
    scale = inv_max / norm                               # (tile_n, 1)

    # Single fused full-tile multiply writes the output.
    o_ref[...] = (x * scale).astype(o_ref.dtype)


def _pick_tile_n(N, D, itemsize):
    """Largest row tile whose double-buffered working set fits comfortably in
    the smallest per-generation VMEM (v7x: 64 MiB physical / 32 MiB scoped)."""
    budget = 36 * 1024 * 1024
    # 2x double-buffered input + output tiles, plus ~2 f32 temporaries per tile.
    per_row = D * (4 * itemsize + 2 * 4)
    tile_n = budget // max(per_row, 1)
    tile_n = max(8, min(1024, (tile_n // 8) * 8))        # sublane multiple of 8
    if tile_n >= N:
        return N                                         # single full block
    return tile_n


def l2_normalization(x, *, tile_n=None):
    """x: (N, D) float array. Returns y = (x/row_max) / (||x/row_max||_2 + eps)."""
    N, D = x.shape
    itemsize = jnp.dtype(x.dtype).itemsize
    if tile_n is None:
        tile_n = _pick_tile_n(N, D, itemsize)
    tile_n = min(tile_n, N)
    if tile_n < N:
        tile_n = max(8, (tile_n // 8) * 8)               # keep (8,128) tiling legal

    grid = (pl.cdiv(N, tile_n),)                         # masked tail, no assert

    # Large enough for the worst-case working set above; safe on v7x's 64 MiB.
    vmem_limit_bytes = 64 * 1024 * 1024

    # TODO(synk): for D < 128 with very large N the output stores stay
    # lane-masked (vst.msk); a lane-dense relayout (folding rows into lanes)
    # would be needed to fully saturate store bandwidth in that regime.
    # TODO(synk): for extremely large D (one 8-row tile exceeding the VMEM
    # budget) add a second "arbitrary" grid axis over D with scratch
    # accumulators for row_max / sum(x^2).
    return pl.pallas_call(
        _l2norm_kernel,
        out_shape=jax.ShapeDtypeStruct((N, D), x.dtype),
        grid_spec=pltpu.PrefetchScalarGridSpec(
            num_scalar_prefetch=0,
            grid=grid,
            in_specs=[pl.BlockSpec((tile_n, D), lambda i: (i, 0))],
            out_specs=pl.BlockSpec((tile_n, D), lambda i: (i, 0)),
        ),
        compiler_params=pltpu.CompilerParams(
            dimension_semantics=("parallel",),
            vmem_limit_bytes=vmem_limit_bytes,
        ),
    )(x)


def _reference(x):
    # Pure-JAX reference mirroring the PyTorch forward exactly.
    x1 = x / jnp.max(x, axis=1, keepdims=True)
    norm = jnp.linalg.norm(x1, ord=2, axis=1, keepdims=True) + EPS
    return x1 / norm


if __name__ == "__main__":
    key = jax.random.PRNGKey(0)
    N, D = 16, 32
    x = jax.random.normal(key, (N, D), dtype=jnp.float32)

    y = l2_normalization(x)
    y = jax.block_until_ready(y)

    y_ref = _reference(x)
    assert y.shape == (N, D) and y.dtype == x.dtype
    assert jnp.allclose(y, y_ref, atol=1e-5, rtol=1e-5)

    # Also exercise the tiled path with a non-divisible N (partial tail block).
    N2, D2 = 300, 256
    x2 = jax.random.normal(jax.random.PRNGKey(1), (N2, D2), dtype=jnp.float32)
    y2 = jax.block_until_ready(l2_normalization(x2, tile_n=128))
    assert jnp.allclose(y2, _reference(x2), atol=1e-5, rtol=1e-5)

    print("KERNEL_OK")
</pallas_src>

<mosaic_0001>
module attributes {stable_mosaic.version = 11 : i64} {
  func.func @_l2norm_kernel(%arg0: i32, %arg1: memref<16x32xf32, #tpu.memory_space<vmem>>, %arg2: memref<16x32xf32, #tpu.memory_space<vmem>>) attributes {dimension_semantics = [#tpu.dimension_semantics<parallel>], iteration_bounds = array<i64: 1>, scalar_prefetch = 0 : i64, scratch_operands = 0 : i64, tpu.core_type = #tpu.core_type<tc>, window_params = [{transform_indices = @transform_0, window_bounds = array<i64: 16, 32>}, {transform_indices = @transform_1, window_bounds = array<i64: 16, 32>}]} {
    %c0 = arith.constant 0 : index
    %c0_0 = arith.constant 0 : index
    %0 = vector.load %arg1[%c0, %c0_0] : memref<16x32xf32, #tpu.memory_space<vmem>>, vector<16x32xf32>
    %cst = arith.constant dense<0xFF800000> : vector<16xf32>
    %1 = vector.multi_reduction <maximumf>, %0, %cst [1] : vector<16x32xf32> to vector<16xf32>
    %2 = vector.shape_cast %1 : vector<16xf32> to vector<16x1xf32>
    %3 = arith.mulf %0, %0 : vector<16x32xf32>
    %cst_1 = arith.constant dense<0.000000e+00> : vector<16xf32>
    %4 = vector.multi_reduction <add>, %3, %cst_1 [1] : vector<16x32xf32> to vector<16xf32>
    %5 = vector.shape_cast %4 : vector<16xf32> to vector<16x1xf32>
    %cst_2 = arith.constant 1.000000e+00 : f32
    %6 = vector.broadcast %cst_2 : f32 to vector<16x1xf32>
    %7 = arith.divf %6, %2 : vector<16x1xf32>
    %8 = math.sqrt %5 : vector<16x1xf32>
    %9 = math.absf %7 : vector<16x1xf32>
    %10 = arith.mulf %8, %9 : vector<16x1xf32>
    %cst_3 = arith.constant 9.99999993E-9 : f32
    %11 = vector.broadcast %cst_3 : f32 to vector<16x1xf32>
    %12 = arith.addf %10, %11 : vector<16x1xf32>
    %13 = arith.divf %7, %12 : vector<16x1xf32>
    %14 = vector.broadcast %13 : vector<16x1xf32> to vector<16x32xf32>
    %15 = arith.mulf %0, %14 : vector<16x32xf32>
    %c0_4 = arith.constant 0 : index
    %c0_5 = arith.constant 0 : index
    %16 = vector.load %arg2[%c0_4, %c0_5] : memref<16x32xf32, #tpu.memory_space<vmem>>, vector<16x32xf32>
    tpu.vector_store %arg2[%c0_4, %c0_5], %15 {strides = array<i32>} : memref<16x32xf32, #tpu.memory_space<vmem>>, vector<16x32xf32>,
    return
  }
  func.func @transform_0(%arg0: i32) -> (i32, i32) {
    %c0_i32 = arith.constant 0 : i32
    %c0_i32_0 = arith.constant 0 : i32
    return %arg0, %c0_i32 : i32, i32
  }
  func.func @transform_1(%arg0: i32) -> (i32, i32) {
    %c0_i32 = arith.constant 0 : i32
    %c0_i32_0 = arith.constant 0 : i32
    return %arg0, %c0_i32 : i32, i32
  }
}

</mosaic_0001>

<llo_original>
// kernel: tpu_custom_call.1
$region0: #{tpu_custom_call.1}
  #allocation0 [shape = 'u32[]', space=smem, size = 0x4, offset = 0x4, fixed_abs, tag = 'smem constant byte address 0x4 - core index']
  #allocation1 [shape = 'u32[144,128]{1,0:T(1,128)}', space=vmem, size = 0x12000, scoped, tag = 'internal scratch']
  %s0 = inlined_call_operand.hbm [shape: f32[16,32], index: 0, kind: input, shape index: {}]
  %s1 = inlined_call_operand.hbm [shape: f32[16,32], index: 1, kind: output, shape index: {}]
  %s2 = sld [smem:[#allocation0]]
  $region18: #{tpu_custom_call.1} parent=0
    _
  %s4 = ssub.s32 1, %s2
  %s5 = scalar_select 0, %s4, %s2
  $region1: #{tpu_custom_call.1} parent=0
    #allocation2 [shape = 'u8[8192]{0}', space=vmem, size = 0x2000, scoped, tag = 'input window, operand 0, single buffered']
    #allocation3 [shape = 's32[1]{0}', space=sflag, size = 0x4, scoped, tag = 'scoped memory for tpu_custom_call.1']
    #allocation4 [shape = 's32[1]{0}', space=sflag, size = 0x4, scoped, tag = 'scoped memory for tpu_custom_call.1']
    #allocation5 [shape = 'u8[8192]{0}', space=vmem, size = 0x2000, scoped, tag = 'output window, operand 0, single buffered']
    %6 = vsyncpa [#allocation3], 0
    %7 = vsyncpa [#allocation4], 0
    // Predicated region
    $region2: #{tpu_custom_call.1} parent=1 // pred_check
      _
    $region3: #{tpu_custom_call.1} parent=1 // pred_check_branch
      %9 = sbr.rel (0) target = $region5
    $region4: #{tpu_custom_call.1} parent=1 // pred_region
      %s11 = ssub.s32 256, 256
      %12 = vsyncadd [#allocation3], %s11
      %s13 = sshll.u32 [#allocation2], 4
      %s14 = int_to_ptr.vmem [resolvable:$true] %s13
      %19 = dma.hbm_to_vmem [thread:$0]  %s0, 256, %s14, [#allocation3], 128, 128, 8
    $region5: #{tpu_custom_call.1} parent=1 // pred_fallthru
      _
    // Predicated region
    $region6: #{tpu_custom_call.1} parent=1 // pred_check
      _
    $region7: #{tpu_custom_call.1} parent=1 // pred_check_branch
      %21 = sbr.rel (0) target = $region9
    $region8: #{tpu_custom_call.1} parent=1 // pred_region
      %22 = dma.done [#allocation3], 256
    $region9: #{tpu_custom_call.1} parent=1 // pred_fallthru
      _
    %v23 = vld [vmem:[#allocation2] sm:$0xff]
    %v24 = vld [vmem:[#allocation2 + $0x8] sm:$0xff]
    %vm25 = vcmask 261120
    %v26 = vsel %vm25, %v23, -inf
    %27 = vmax.xlane.f32.xlu0 %v26
    %v28 = vpop.xlane.xlu0 %27
    %v29 = vsel %vm25, %v24, -inf
    %30 = vmax.xlane.f32.xlu0 %v29
    %v31 = vpop.xlane.xlu0 %30
    %v32 = vmul.f32 %v23, %v23
    %v33 = vmul.f32 %v24, %v24
    %v34 = vsel %vm25, %v32, 0.0
    %35 = vadd.xlane.f32.xlu0 %v34
    %v36 = vpop.xlane.xlu0 %35
    %v37 = vsel %vm25, %v33, 0.0
    %38 = vadd.xlane.f32.xlu0 %v37
    %v39 = vpop.xlane.xlu0 %38
    %v40 = vrcp.pop %v28
    %v41 = vmul.f32 1.0, %v40
    %v42 = vrcp.pop %v31
    %v43 = vmul.f32 1.0, %v42
    %v44 = vrsqrt.pop %v36
    %v45 = vmul.f32 %v36, %v44
    %vm46 = vcmp.eq.f32.partialorder %v36, inf
    %v47 = vsel %vm46, %v36, %v45
    %vm48 = vcmp.eq.f32.partialorder %v36, 0.0
    %v49 = vand.u32 %v36, 2147483648
    %v50 = vsel %vm48, %v49, %v47
    %v51 = vrsqrt.pop %v39
    %v52 = vmul.f32 %v39, %v51
    %vm53 = vcmp.eq.f32.partialorder %v39, inf
    %v54 = vsel %vm53, %v39, %v52
    %vm55 = vcmp.eq.f32.partialorder %v39, 0.0
    %v56 = vand.u32 %v39, 2147483648
    %v57 = vsel %vm55, %v56, %v54
    %v58 = vand.u32 2147483647, %v41
    %v59 = vand.u32 2147483647, %v43
    %v60 = vmul.f32 %v50, %v58
    %v61 = vmul.f32 %v57, %v59
    %v62 = vadd.f32 %v60, 1e-08
    %v63 = vadd.f32 %v61, 1e-08
    %v64 = vrcp.pop %v62
    %v65 = vmul.f32 %v41, %v64
    %v66 = vrcp.pop %v63
    %v67 = vmul.f32 %v43, %v66
    %v68 = vmul.f32 %v23, %v65
    %v69 = vmul.f32 %v24, %v67
    %70 = vst.msk [vmem:[#allocation5] sm:$0xff] %vm25, %v68
    %71 = vst.msk [vmem:[#allocation5 + $0x8] sm:$0xff] %vm25, %v69
    // Predicated region
    $region10: #{tpu_custom_call.1} parent=1 // pred_check
      _
    $region11: #{tpu_custom_call.1} parent=1 // pred_check_branch
      %73 = sbr.rel (0) target = $region13
    $region12: #{tpu_custom_call.1} parent=1 // pred_region
      %s75 = ssub.s32 256, 256
      %76 = vsyncadd [#allocation4], %s75
      %s77 = sshll.u32 [#allocation5], 4
      %s78 = int_to_ptr.vmem [resolvable:$true] %s77
      %83 = dma.vmem_to_hbm [thread:$0]  %s78, 256, %s1, [#allocation4], 128, 128, 8
    $region13: #{tpu_custom_call.1} parent=1 // pred_fallthru
      _
    // Predicated region
    $region14: #{tpu_custom_call.1} parent=1 // pred_check
      _
    $region15: #{tpu_custom_call.1} parent=1 // pred_check_branch
      %85 = sbr.rel (0) target = $region17
    $region16: #{tpu_custom_call.1} parent=1 // pred_region
      %86 = dma.done [#allocation4], 256
    $region17: #{tpu_custom_call.1} parent=1 // pred_fallthru
      _
    %87 = vsyncpa [#allocation3], 1
    %88 = vsyncpa [#allocation4], 1

</llo_original>
